<compile_context>
chip_gen: v7x
topology: tpu7x:2x2x1
jax: 0.10.0
libtpu: 0.0.40
codegen_flags: <defaults>
</compile_context>

<pallas_src>
import functools
import math

import jax
import jax.numpy as jnp
from jax.experimental import pallas as pl
from jax.experimental.pallas import tpu as pltpu

VMEM_LIMIT = 32 * 1024 * 1024  # safe on v5e/v6e (128 MiB phys) and v7x (64 MiB phys / 32 default)


# ----------------------------------------------------------------------------- helpers
def _round_up(x, m):
    return ((x + m - 1) // m) * m


def _pad2(x, rows, cols):
    r, c = x.shape
    if r == rows and c == cols:
        return x
    return jnp.pad(x, ((0, rows - r), (0, cols - c)))


# ----------------------------------------------------------------------------- generic matmul kernel
def _mm_kernel(a_ref, b_ref, bias_ref, o_ref, acc_ref, *, relu):
    @pl.when(pl.program_id(2) == 0)
    def _():
        acc_ref[...] = jnp.zeros_like(acc_ref)

    acc_ref[...] += jnp.dot(a_ref[...], b_ref[...], preferred_element_type=jnp.float32)

    @pl.when(pl.program_id(2) == pl.num_programs(2) - 1)
    def _():
        out = acc_ref[...] + bias_ref[...]
        if relu:
            out = jnp.maximum(out, 0.0)
        o_ref[...] = out.astype(o_ref.dtype)


@functools.partial(jax.jit, static_argnames=("relu", "bf16"))
def pallas_matmul(a, b, bias=None, relu=False, bf16=True):
    """a:(M,K) @ b:(K,N) [+ bias(N,)] [relu] -> (M,N) f32; bf16 MXU operands by default."""
    M, K = a.shape
    K2, N = b.shape
    assert K == K2
    cdt = jnp.bfloat16 if bf16 else jnp.float32
    if bias is None:
        bias = jnp.zeros((N,), jnp.float32)

    TM = min(256, _round_up(M, 16))
    TN = min(256, _round_up(N, 128))
    TK = min(512, _round_up(K, 128))
    Mp, Kp, Np = _round_up(M, TM), _round_up(K, TK), _round_up(N, TN)

    a_p = _pad2(a.astype(cdt), Mp, Kp)
    b_p = _pad2(b.astype(cdt), Kp, Np)
    bias_p = _pad2(bias.astype(jnp.float32).reshape(1, N), 1, Np)

    grid = (Mp // TM, Np // TN, Kp // TK)
    out = pl.pallas_call(
        functools.partial(_mm_kernel, relu=relu),
        out_shape=jax.ShapeDtypeStruct((Mp, Np), jnp.float32),
        grid_spec=pltpu.PrefetchScalarGridSpec(
            num_scalar_prefetch=0,
            grid=grid,
            in_specs=[
                pl.BlockSpec((TM, TK), lambda i, j, k: (i, k)),
                pl.BlockSpec((TK, TN), lambda i, j, k: (k, j)),
                pl.BlockSpec((1, TN), lambda i, j, k: (0, j)),
            ],
            out_specs=pl.BlockSpec((TM, TN), lambda i, j, k: (i, j)),
            scratch_shapes=[pltpu.VMEM((TM, TN), jnp.float32)],
        ),
        compiler_params=pltpu.CompilerParams(
            dimension_semantics=("parallel", "parallel", "arbitrary"),
            vmem_limit_bytes=VMEM_LIMIT),
    )(a_p, b_p, bias_p)
    return out[:M, :N]


# ----------------------------------------------------------------------------- direct 3x3 conv kernel
def _conv3x3_kernel(x_ref, w_ref, b_ref, o_ref, *, row_stride, tm):
    # x_ref: (L2, 3*Cin) bf16 full flattened row-patched image (resident per batch image)
    # w_ref: (3, 3*Cin, Cout) bf16 ; b_ref: (1, Cout) f32 ; o_ref: (TM, Cout) bf16
    base = pl.program_id(1) * tm
    acc = jnp.zeros(o_ref.shape, jnp.float32)
    for dy in range(3):
        start = pl.multiple_of(base + dy * row_stride, 16)
        a = x_ref[pl.ds(start, tm), :]
        acc = acc + jnp.dot(a, w_ref[dy], preferred_element_type=jnp.float32)
    o_ref[...] = jnp.maximum(acc + b_ref[...], 0.0).astype(o_ref.dtype)


@jax.jit
def conv3x3_relu(x_nhwc, w_hwio, bias):
    """3x3 conv (padding=1) + bias + ReLU. No im2col: only a 3x W-direction row-patch
    (built once, bf16); the 3 H-direction taps are accumulated inside the kernel from a
    VMEM-resident flattened image with 16-aligned row offsets."""
    N, H, W, Cin = x_nhwc.shape
    Cout = w_hwio.shape[-1]
    Cin_p = _round_up(Cin, 8)
    Ws = _round_up(W, 16)  # padded row stride -> all tap offsets multiples of 16

    # spatial pad (1 top/bottom, 1 left, 1 + (Ws - W) right) + channel pad, bf16
    xp = jnp.pad(x_nhwc.astype(jnp.bfloat16),
                 ((0, 0), (1, 1), (1, 1 + Ws - W), (0, Cin_p - Cin)))
    # W-direction patches: channels become (dx, c), dx in {0,1,2}
    xg = jnp.concatenate([xp[:, :, dx:dx + Ws, :] for dx in range(3)], axis=-1)
    L2 = (H + 2) * Ws
    xf = xg.reshape(N, L2, 3 * Cin_p)

    wk = jnp.pad(w_hwio.astype(jnp.bfloat16),
                 ((0, 0), (0, 0), (0, Cin_p - Cin), (0, 0))).reshape(3, 3 * Cin_p, Cout)
    bk = bias.astype(jnp.float32).reshape(1, Cout)

    M1 = H * Ws  # flattened output rows (Ws-W garbage cols per row, sliced off later)
    TM = 16
    for t in range(16, 513, 16):  # largest tile <= 512 that exactly divides M1
        if M1 % t == 0:
            TM = t

    grid = (N, M1 // TM)
    y = pl.pallas_call(
        functools.partial(_conv3x3_kernel, row_stride=Ws, tm=TM),
        out_shape=jax.ShapeDtypeStruct((N, M1, Cout), jnp.bfloat16),
        grid_spec=pltpu.PrefetchScalarGridSpec(
            num_scalar_prefetch=0,
            grid=grid,
            in_specs=[
                pl.BlockSpec((None, L2, 3 * Cin_p), lambda n, m: (n, 0, 0)),
                pl.BlockSpec((3, 3 * Cin_p, Cout), lambda n, m: (0, 0, 0)),
                pl.BlockSpec((1, Cout), lambda n, m: (0, 0)),
            ],
            out_specs=pl.BlockSpec((None, TM, Cout), lambda n, m: (n, m, 0)),
        ),
        compiler_params=pltpu.CompilerParams(
            dimension_semantics=("parallel", "parallel"),
            vmem_limit_bytes=VMEM_LIMIT),
    )(xf, wk, bk)
    return y.reshape(N, H, Ws, Cout)[:, :, :W, :]


# ----------------------------------------------------------------------------- L1 reduction kernel
def _l1_partial_kernel(a_ref, b_ref, o_ref):
    @pl.when(pl.program_id(1) == 0)
    def _():
        o_ref[...] = jnp.zeros_like(o_ref)

    d = jnp.abs(a_ref[...] - b_ref[...])
    o_ref[...] += d.reshape(-1, 8, d.shape[-1]).sum(axis=0)[None]


@jax.jit
def l1_mean(a, b):
    """mean(|a - b|) over all elements (torch L1Loss 'mean')."""
    n = a.size
    af = a.reshape(-1).astype(jnp.float32)
    bf = b.reshape(-1).astype(jnp.float32)
    W0 = 512
    R = -(-n // W0)
    NC = 2 if R >= 512 else 1           # leading parallel axis -> both TCs on v7x
    Rpc0 = -(-R // NC)
    BR = min(256, _round_up(Rpc0, 8))
    Rpc = _round_up(Rpc0, BR)
    Rtot = NC * Rpc
    pad = Rtot * W0 - n
    af = jnp.pad(af, (0, pad)).reshape(Rtot, W0)
    bf = jnp.pad(bf, (0, pad)).reshape(Rtot, W0)
    nblk = Rpc // BR

    partials = pl.pallas_call(
        _l1_partial_kernel,
        out_shape=jax.ShapeDtypeStruct((NC, 8, W0), jnp.float32),
        grid_spec=pltpu.PrefetchScalarGridSpec(
            num_scalar_prefetch=0,
            grid=(NC, nblk),
            in_specs=[
                pl.BlockSpec((BR, W0), lambda i, j: (i * nblk + j, 0)),
                pl.BlockSpec((BR, W0), lambda i, j: (i * nblk + j, 0)),
            ],
            out_specs=pl.BlockSpec((1, 8, W0), lambda i, j: (i, 0, 0)),
        ),
        compiler_params=pltpu.CompilerParams(
            dimension_semantics=("parallel", "arbitrary"),
            vmem_limit_bytes=VMEM_LIMIT),
    )(af, bf)
    return jnp.sum(partials) / jnp.float32(n)


# ----------------------------------------------------------------------------- bilinear interpolate
def _resize_matrix(out_size, in_size):
    # F.interpolate(mode='bilinear', align_corners=True) separable weights, (out, in).
    if out_size == 1:
        src = jnp.zeros((1,), jnp.float32)
    else:
        src = jnp.arange(out_size, dtype=jnp.float32) * ((in_size - 1) / (out_size - 1))
    i0 = jnp.clip(jnp.floor(src).astype(jnp.int32), 0, in_size - 1)
    i1 = jnp.clip(i0 + 1, 0, in_size - 1)
    w1 = src - i0.astype(jnp.float32)
    w0 = 1.0 - w1
    m0 = jax.nn.one_hot(i0, in_size, dtype=jnp.float32) * w0[:, None]
    m1 = jax.nn.one_hot(i1, in_size, dtype=jnp.float32) * w1[:, None]
    return m0 + m1


def bilinear_resize_to_nhwc(x_nchw, factor):
    """NCHW -> resized NHWC; matches F.interpolate(bilinear, align_corners=True).
    W-resize is a pure reshape+matmul; only 2 small transposes total."""
    N, C, H, W = x_nchw.shape
    Ho = int(math.floor(H * factor))
    Wo = int(math.floor(W * factor))
    if Ho == H and Wo == W:
        return jnp.transpose(x_nchw, (0, 2, 3, 1))
    Rw = _resize_matrix(Wo, W)
    Rh = _resize_matrix(Ho, H)
    # resize along W (no transpose needed in NCHW): (N*C*H, W) @ (W, Wo)
    t = pallas_matmul(x_nchw.reshape(N * C * H, W), Rw.T, bf16=False)
    t = t.reshape(N, C, H, Wo).transpose(0, 3, 1, 2)            # (N, Wo, C, H)
    # resize along H: (N*Wo*C, H) @ (H, Ho)
    t = pallas_matmul(t.reshape(N * Wo * C, H), Rh.T, bf16=False)
    return t.reshape(N, Wo, C, Ho).transpose(0, 3, 1, 2)         # (N, Ho, Wo, C)


# ----------------------------------------------------------------------------- VGG19 (up to relu5_2)
VGG_CFG = [
    ("conv", 3, 64, "relu1_1"),
    ("conv", 64, 64, "relu1_2"),
    ("pool",),
    ("conv", 64, 128, "relu2_1"),
    ("conv", 128, 128, "relu2_2"),
    ("pool",),
    ("conv", 128, 256, "relu3_1"),
    ("conv", 256, 256, "relu3_2"),
    ("conv", 256, 256, "relu3_3"),
    ("conv", 256, 256, "relu3_4"),
    ("pool",),
    ("conv", 256, 512, "relu4_1"),
    ("conv", 512, 512, "relu4_2"),
    ("conv", 512, 512, "relu4_3"),
    ("conv", 512, 512, "relu4_4"),
    ("pool",),
    ("conv", 512, 512, "relu5_1"),
    ("conv", 512, 512, "relu5_2"),
]


def init_vgg_params(key):
    params = []
    for layer in VGG_CFG:
        if layer[0] != "conv":
            continue
        _, cin, cout, _ = layer
        key, sub = jax.random.split(key)
        std = math.sqrt(2.0 / (9 * cin))
        w = jax.random.normal(sub, (3, 3, cin, cout), jnp.float32) * std  # HWIO
        b = jnp.zeros((cout,), jnp.float32)
        params.append((w, b))
    return params


def vgg_features(x_nhwc, params):
    x = x_nhwc
    feats = {}
    pi = 0
    for layer in VGG_CFG:
        if layer[0] == "pool":
            N, H, W, C = x.shape
            x = x.reshape(N, H // 2, 2, W // 2, 2, C).max(axis=(2, 4))  # 2x2/2 maxpool (glue)
        else:
            _, _, _, name = layer
            w, b = params[pi]
            pi += 1
            x = conv3x3_relu(x, w, b)
            if name in ("relu3_2", "relu4_2", "relu5_2"):
                feats[name] = x  # NHWC bf16
    return feats


# ----------------------------------------------------------------------------- losses
IMAGENET_MEAN = jnp.array([0.485, 0.456, 0.406], jnp.float32).reshape(1, 1, 1, 3)
IMAGENET_STD = jnp.array([0.229, 0.224, 0.225], jnp.float32).reshape(1, 1, 1, 3)


def normalize_batch(x_nhwc):
    return (x_nhwc - IMAGENET_MEAN) / IMAGENET_STD


def swd_criterion(fake, true, key):
    """Sliced-Wasserstein distance between (N,H,W,C) feature maps."""
    N, H, W, C = true.shape
    P = C // 2
    proj = jax.random.normal(key, (P, C), jnp.float32)
    proj = proj / jnp.maximum(jnp.linalg.norm(proj, axis=1, keepdims=True), 1e-12)
    projT = proj.T  # (C, P)

    def project(s):
        p = pallas_matmul(s.reshape(N * H * W, C), projT)  # bf16 operands, f32 out
        return p.reshape(N, H * W, P)

    st = jnp.sort(project(true), axis=1)
    sf = jnp.sort(project(fake), axis=1)
    return l1_mean(st, sf)


def swd_loss(img1, img2, vgg_params, key):
    x = normalize_batch(img1)
    y = normalize_batch(img2)
    fx = vgg_features(x, vgg_params)
    fy = vgg_features(y, vgg_params)
    k1, k2, k3 = jax.random.split(key, 3)
    s = swd_criterion(fx["relu3_2"], fy["relu3_2"], k1) * 1.0
    s = s + swd_criterion(fx["relu4_2"], fy["relu4_2"], k2) * 1.0
    s = s + swd_criterion(fx["relu5_2"], fy["relu5_2"], k3) * 2.0
    return s * 5.0 / 100.0


def multi_loss(sr, hr, vgg_params, key):
    """MultiLoss.forward(sr, hr) -> (loss_L1, loss_SWD, loss_L1 + loss_SWD)."""
    loss_l1 = jnp.float32(0.0)
    loss_swd = jnp.float32(0.0)
    for idx, scale in enumerate([0.5, 1, 2, 4]):
        factor = scale / 4.0
        data_sr = bilinear_resize_to_nhwc(sr, factor)
        data_hr = bilinear_resize_to_nhwc(hr, factor)
        loss_l1 = loss_l1 + l1_mean(data_sr, data_hr) * scale
        loss_swd = loss_swd + swd_loss(data_sr, data_hr, vgg_params,
                                       jax.random.fold_in(key, idx)) * scale
    loss_l1 = loss_l1 / 7.5
    loss_swd = loss_swd / 7.5
    return loss_l1, loss_swd, loss_l1 + loss_swd


# ----------------------------------------------------------------------------- main
if __name__ == "__main__":
    key = jax.random.PRNGKey(0)
    k_sr, k_hr, k_vgg, k_swd = jax.random.split(key, 4)

    # Smallest valid shape: the 0.125x scale must still survive 4 VGG maxpools (H >= 128).
    N, C, H, W = 2, 3, 128, 128
    sr = jax.random.uniform(k_sr, (N, C, H, W), jnp.float32)
    hr = jax.random.uniform(k_hr, (N, C, H, W), jnp.float32)

    vgg_params = init_vgg_params(k_vgg)

    loss_l1, loss_swd, loss_total = multi_loss(sr, hr, vgg_params, k_swd)
    jax.block_until_ready(loss_total)
    print("KERNEL_OK")
</pallas_src>

<mosaic_0001>
module attributes {stable_mosaic.version = 11 : i64} {
  func.func @_mm_kernel(%arg0: i32, %arg1: i32, %arg2: i32, %arg3: memref<256x128xf32, #tpu.memory_space<vmem>>, %arg4: memref<128x128xf32, #tpu.memory_space<vmem>>, %arg5: memref<1x128xf32, #tpu.memory_space<vmem>>, %arg6: memref<256x128xf32, #tpu.memory_space<vmem>>, %arg7: memref<256x128xf32, #tpu.memory_space<vmem>>) attributes {dimension_semantics = [#tpu.dimension_semantics<parallel>, #tpu.dimension_semantics<parallel>, #tpu.dimension_semantics<arbitrary>], iteration_bounds = array<i64: 3, 1, 1>, scalar_prefetch = 0 : i64, scratch_operands = 1 : i64, tpu.core_type = #tpu.core_type<tc>, window_params = [{transform_indices = @transform_0, window_bounds = array<i64: 256, 128>}, {transform_indices = @transform_1, window_bounds = array<i64: 128, 128>}, {transform_indices = @transform_2, window_bounds = array<i64: 1, 128>}, {transform_indices = @transform_3, window_bounds = array<i64: 256, 128>}]} {
    %c0_i32 = arith.constant 0 : i32
    %0 = arith.cmpi eq, %arg2, %c0_i32 : i32
    %1 = arith.extui %0 : i1 to i32
    %c0_i32_0 = arith.constant 0 : i32
    %2 = arith.cmpi ne, %1, %c0_i32_0 : i32
    scf.if %2 {
      %cst_10 = arith.constant 0.000000e+00 : f32
      %12 = vector.broadcast %cst_10 : f32 to vector<256x128xf32>
      %c0_11 = arith.constant 0 : index
      %c0_12 = arith.constant 0 : index
      %13 = vector.load %arg7[%c0_11, %c0_12] : memref<256x128xf32, #tpu.memory_space<vmem>>, vector<256x128xf32>
      tpu.vector_store %arg7[%c0_11, %c0_12], %12 {strides = array<i32>} : memref<256x128xf32, #tpu.memory_space<vmem>>, vector<256x128xf32>,
    } else {
    }
    %c0 = arith.constant 0 : index
    %c0_1 = arith.constant 0 : index
    %3 = vector.load %arg7[%c0, %c0_1] : memref<256x128xf32, #tpu.memory_space<vmem>>, vector<256x128xf32>
    %c0_2 = arith.constant 0 : index
    %c0_3 = arith.constant 0 : index
    %4 = vector.load %arg3[%c0_2, %c0_3] : memref<256x128xf32, #tpu.memory_space<vmem>>, vector<256x128xf32>
    %c0_4 = arith.constant 0 : index
    %c0_5 = arith.constant 0 : index
    %5 = vector.load %arg4[%c0_4, %c0_5] : memref<128x128xf32, #tpu.memory_space<vmem>>, vector<128x128xf32>
    %cst = arith.constant dense<0.000000e+00> : vector<256x128xf32>
    %6 = tpu.matmul %4, %5, %cst {dimension_numbers = #tpu.dot_dimension_numbers<[1], [0], [0], [1], [0, 0, 1, 1], [], []>} : vector<256x128xf32>, vector<128x128xf32>, vector<256x128xf32> -> vector<256x128xf32>
    %7 = arith.addf %3, %6 : vector<256x128xf32>
    %c0_6 = arith.constant 0 : index
    %c0_7 = arith.constant 0 : index
    %8 = vector.load %arg7[%c0_6, %c0_7] : memref<256x128xf32, #tpu.memory_space<vmem>>, vector<256x128xf32>
    tpu.vector_store %arg7[%c0_6, %c0_7], %7 {strides = array<i32>} : memref<256x128xf32, #tpu.memory_space<vmem>>, vector<256x128xf32>,
    %c0_i32_8 = arith.constant 0 : i32
    %9 = arith.cmpi eq, %arg2, %c0_i32_8 : i32
    %10 = arith.extui %9 : i1 to i32
    %c0_i32_9 = arith.constant 0 : i32
    %11 = arith.cmpi ne, %10, %c0_i32_9 : i32
    scf.if %11 {
      %c0_10 = arith.constant 0 : index
      %c0_11 = arith.constant 0 : index
      %12 = vector.load %arg7[%c0_10, %c0_11] : memref<256x128xf32, #tpu.memory_space<vmem>>, vector<256x128xf32>
      %c0_12 = arith.constant 0 : index
      %c0_13 = arith.constant 0 : index
      %13 = vector.load %arg5[%c0_12, %c0_13] : memref<1x128xf32, #tpu.memory_space<vmem>>, vector<1x128xf32>
      %14 = vector.broadcast %13 : vector<1x128xf32> to vector<256x128xf32>
      %15 = arith.addf %12, %14 : vector<256x128xf32>
      %c0_14 = arith.constant 0 : index
      %c0_15 = arith.constant 0 : index
      %16 = vector.load %arg6[%c0_14, %c0_15] : memref<256x128xf32, #tpu.memory_space<vmem>>, vector<256x128xf32>
      tpu.vector_store %arg6[%c0_14, %c0_15], %15 {strides = array<i32>} : memref<256x128xf32, #tpu.memory_space<vmem>>, vector<256x128xf32>,
    } else {
    }
    return
  }
  func.func @transform_0(%arg0: i32, %arg1: i32, %arg2: i32) -> (i32, i32) {
    %c0_i32 = arith.constant 0 : i32
    return %arg0, %arg2 : i32, i32
  }
  func.func @transform_1(%arg0: i32, %arg1: i32, %arg2: i32) -> (i32, i32) {
    %c0_i32 = arith.constant 0 : i32
    return %arg2, %arg1 : i32, i32
  }
  func.func @transform_2(%arg0: i32, %arg1: i32, %arg2: i32) -> (i32, i32) {
    %c0_i32 = arith.constant 0 : i32
    %c0_i32_0 = arith.constant 0 : i32
    return %c0_i32, %arg1 : i32, i32
  }
  func.func @transform_3(%arg0: i32, %arg1: i32, %arg2: i32) -> (i32, i32) {
    %c0_i32 = arith.constant 0 : i32
    return %arg0, %arg1 : i32, i32
  }
}

</mosaic_0001>

<llo_original>
// kernel: pallas_matmul.1
$region0: #{pallas_matmul.1}
  #allocation0 [shape = 'u32[]', space=smem, size = 0x4, offset = 0x4, fixed_abs, tag = 'smem constant byte address 0x4 - core index']
  #allocation1 [shape = 'u32[144,128]{1,0:T(1,128)}', space=vmem, size = 0x12000, scoped, tag = 'internal scratch']
  #allocation2 [shape = 'f32[256,128]{1,0:T(8,128)}', space=vmem, size = 0x20000, scoped, tag = 'scratch operand']
  %s0 = inlined_call_operand.hbm [shape: f32[768,128], index: 0, kind: input, shape index: {}]
  %s1 = inlined_call_operand.vmem [shape: f32[128,128], index: 1, kind: input, shape index: {}]
  %s2 = inlined_call_operand.vmem [shape: f32[1,128], index: 2, kind: input, shape index: {}]
  %s3 = inlined_call_operand.vmem [shape: f32[768,128], index: 3, kind: output, shape index: {}]
  %s4 = sld [smem:[#allocation0]]
  $region57: #{pallas_matmul.1} parent=0
    _
  %s6 = ssub.s32 1, %s4
  %s7 = scalar_select 0, %s6, %s4
  $region1: #{pallas_matmul.1} parent=0
    #allocation3 [shape = 'u8[262144]{0}', space=vmem, size = 0x40000, scoped, tag = 'input window, operand 0']
    #allocation4 [shape = 's32[2]{0}', space=sflag, size = 0x8, scoped, tag = 'scoped memory for pallas_matmul.1']
    %8 = vsyncpa [#allocation4], 0
    %s9 = scalar_lea.sflag [#allocation4], 1
    %10 = vsyncpa %s9, 0
    loop: start=0, step=1, limit=5
    $region2: #{pallas_matmul.1} parent=1 // loop_pre_header
      _
    $region3: #{pallas_matmul.1} parent=1 // loop_header
      %s12 = sphi 0, %s16
      %p13 = scmp.ge.s32.totalorder %s12, 5
      %s19 = sphi 0, %s38
      %s20 = sphi 0, %s34
      %s21 = sphi 0, %s30
      %s22 = sphi 0, %s19
      %s23 = sphi 0, %s20
      %s24 = sphi 0, %s21
      %s25 = sphi 0, %s22
      %s26 = sphi 0, %s23
      %s27 = sphi 0, %s24
      %s43 = sphi 0, %s45
      %s46 = sphi 0, %s43
      %s47 = sphi 0, %s46
      %s63 = sphi 0, %s47
      %s71 = sphi 0, %s73
      %s74 = sphi 0, %s71
      %s75 = sphi 0, %s74
      %s91 = sphi 0, %s75
      %s97 = sphi 0, %s99
      %s100 = sphi 0, %s97
      %s101 = sphi 0, %s100
      %s117 = sphi 0, %s101
      %s125 = sphi 0, %s127
      %s128 = sphi 0, %s125
      %s129 = sphi 0, %s128
      %s145 = sphi 0, %s129
    $region4: #{pallas_matmul.1} parent=1 // loop_header_branch
      %15 = sbr.rel (%p13) target = $region8
    $region5: #{pallas_matmul.1} parent=1 // loop_body
      %s17 = ssub.s32 %s12, 1
      %s18 = ssub.s32 %s12, 2
      %s28 = sadd.s32 1, %s21
      %p29 = scmp.ge.s32.totalorder %s28, 1
      %s30 = scalar_select %p29, 0, %s28
      %s31 = sadd.s32 1, %s20
      %s32 = scalar_select %p29, %s31, %s20
      %p33 = scmp.ge.s32.totalorder %s32, 1
      %s34 = scalar_select %p33, 0, %s32
      %s35 = sadd.s32 1, %s19
      %s36 = scalar_select %p33, %s35, %s19
      %p37 = scmp.ge.s32.totalorder %s36, 3
      %s38 = scalar_select %p37, 0, %s36
      %s39 = ssub.s32 %s19, %s38
      %s40 = ssub.s32 %s21, %s30
      %s41 = sor.u32 %s39, %s40
      %p42 = scmp.eq.s32.totalorder %s41, 0
      %s44 = sadd.s32 %s43, 1
      %s45 = scalar_select %p42, %s43, %s44
      %p48 = pneg %p42
      %p49 = scmp.eq.s32.totalorder %s12, 2
      %p50 = por %p48, %p49
      %p51 = scmp.ne.s32.totalorder %s43, %s46
      %p52 = scmp.eq.s32.totalorder %s12, 0
      %p53 = por %p51, %p52
      %p54 = scmp.ne.s32.totalorder %s43, %s46
      %p55 = scmp.eq.s32.totalorder %s17, 2
      %p56 = por %p54, %p55
      %p57 = scmp.ne.s32.totalorder %s46, %s47
      %p58 = scmp.eq.s32.totalorder %s17, 0
      %p59 = por %p57, %p58
      %p60 = scmp.ne.s32.totalorder %s46, %s47
      %p61 = scmp.eq.s32.totalorder %s18, 2
      %p62 = por %p60, %p61
      %p64 = scmp.ne.s32.totalorder %s47, %s63
      %p65 = scmp.eq.s32.totalorder %s18, 0
      %p66 = por %p64, %p65
      %s67 = ssub.s32 %s21, %s30
      %s68 = ssub.s32 %s20, %s34
      %s69 = sor.u32 %s67, %s68
      %p70 = scmp.eq.s32.totalorder %s69, 0
      %s72 = sadd.s32 %s71, 1
      %s73 = scalar_select %p70, %s71, %s72
      %p76 = pneg %p70
      %p77 = scmp.eq.s32.totalorder %s12, 2
      %p78 = por %p76, %p77
      %p79 = scmp.ne.s32.totalorder %s71, %s74
      %p80 = scmp.eq.s32.totalorder %s12, 0
      %p81 = por %p79, %p80
      %p82 = scmp.ne.s32.totalorder %s71, %s74
      %p83 = scmp.eq.s32.totalorder %s17, 2
      %p84 = por %p82, %p83
      %p85 = scmp.ne.s32.totalorder %s74, %s75
      %p86 = scmp.eq.s32.totalorder %s17, 0
      %p87 = por %p85, %p86
      %p88 = scmp.ne.s32.totalorder %s74, %s75
      %p89 = scmp.eq.s32.totalorder %s18, 2
      %p90 = por %p88, %p89
      %p92 = scmp.ne.s32.totalorder %s75, %s91
      %p93 = scmp.eq.s32.totalorder %s18, 0
      %p94 = por %p92, %p93
      %s95 = ssub.s32 %s20, %s34
      %p96 = scmp.eq.s32.totalorder %s95, 0
      %s98 = sadd.s32 %s97, 1
      %s99 = scalar_select %p96, %s97, %s98
      %p102 = pneg %p96
      %p103 = scmp.eq.s32.totalorder %s12, 2
      %p104 = por %p102, %p103
      %p105 = scmp.ne.s32.totalorder %s97, %s100
      %p106 = scmp.eq.s32.totalorder %s12, 0
      %p107 = por %p105, %p106
      %p108 = scmp.ne.s32.totalorder %s97, %s100
      %p109 = scmp.eq.s32.totalorder %s17, 2
      %p110 = por %p108, %p109
      %p111 = scmp.ne.s32.totalorder %s100, %s101
      %p112 = scmp.eq.s32.totalorder %s17, 0
      %p113 = por %p111, %p112
      %p114 = scmp.ne.s32.totalorder %s100, %s101
      %p115 = scmp.eq.s32.totalorder %s18, 2
      %p116 = por %p114, %p115
      %p118 = scmp.ne.s32.totalorder %s101, %s117
      %p119 = scmp.eq.s32.totalorder %s18, 0
      %p120 = por %p118, %p119
      %s121 = ssub.s32 %s19, %s38
      %s122 = ssub.s32 %s20, %s34
      %s123 = sor.u32 %s121, %s122
      %p124 = scmp.eq.s32.totalorder %s123, 0
      %s126 = sadd.s32 %s125, 1
      %s127 = scalar_select %p124, %s125, %s126
      %p130 = pneg %p124
      %p131 = scmp.eq.s32.totalorder %s12, 2
      %p132 = por %p130, %p131
      %p133 = scmp.ne.s32.totalorder %s125, %s128
      %p134 = scmp.eq.s32.totalorder %s12, 0
      %p135 = por %p133, %p134
      %p136 = scmp.ne.s32.totalorder %s125, %s128
      %p137 = scmp.eq.s32.totalorder %s17, 2
      %p138 = por %p136, %p137
      %p139 = scmp.ne.s32.totalorder %s128, %s129
      %p140 = scmp.eq.s32.totalorder %s17, 0
      %p141 = por %p139, %p140
      %p142 = scmp.ne.s32.totalorder %s128, %s129
      %p143 = scmp.eq.s32.totalorder %s18, 2
      %p144 = por %p142, %p143
      %p146 = scmp.ne.s32.totalorder %s129, %s145
      %p147 = scmp.eq.s32.totalorder %s18, 0
      %p148 = por %p146, %p147
      %p149 = scmp.le.s32.totalorder 1, %s12
      %p150 = scmp.lt.s32.totalorder %s12, 4
      %p151 = pnand %p149, %p150
      %p152 = pneg %p151
      // Predicated region
      $region9: #{pallas_matmul.1} parent=5 // pred_check
        _
      $region10: #{pallas_matmul.1} parent=5 // pred_check_branch
        %154 = sbr.rel (%p151) target = $region12
      $region11: #{pallas_matmul.1} parent=5 // pred_region
        %s155 = ssub.s32 %s12, 1
        // Predicated region
        $region13: #{pallas_matmul.1} parent=11 // pred_check
          %p156 = pneg %p87
        $region14: #{pallas_matmul.1} parent=11 // pred_check_branch
          %158 = sbr.rel (%p156) target = $region16
        $region15: #{pallas_matmul.1} parent=11 // pred_region
          %s159 = smul.u32 16, %s24
          %p160 = scmp.lt.s32.totalorder %s159, 15
          %s161 = scalar_select %p160, %s159, 15
          %p162 = scmp.lt.s32.totalorder %s23, 0
          %s163 = scalar_select %p162, %s23, 0
          %s164 = sadd.s32 %s163, %s161
          %s165 = smul.addr %s164, 8
          %s166 = scalar_lea.vmem %s1, %s165
          %s167 = smul.u32 16, %s24
        $region16: #{pallas_matmul.1} parent=11 // pred_fallthru
          _
        // Predicated region
        $region17: #{pallas_matmul.1} parent=11 // pred_check
          %p168 = pneg %p113
        $region18: #{pallas_matmul.1} parent=11 // pred_check_branch
          %170 = sbr.rel (%p168) target = $region20
        $region19: #{pallas_matmul.1} parent=11 // pred_region
          %p171 = scmp.lt.s32.totalorder %s23, 0
          %s172 = scalar_select %p171, %s23, 0
          %s173 = scalar_lea.vmem %s2, %s172
        $region20: #{pallas_matmul.1} parent=11 // pred_fallthru
          _
      $region12: #{pallas_matmul.1} parent=5 // pred_fallthru
        _
      %p174 = scmp.lt.s32.totalorder %s12, 3
      // Predicated region
      $region21: #{pallas_matmul.1} parent=5 // pred_check
        %p175 = pneg %p174
      $region22: #{pallas_matmul.1} parent=5 // pred_check_branch
        %177 = sbr.rel (%p175) target = $region24
      $region23: #{pallas_matmul.1} parent=5 // pred_region
        // Predicated region
        $region25: #{pallas_matmul.1} parent=23 // pred_check
          %p178 = pneg %p53
        $region26: #{pallas_matmul.1} parent=23 // pred_check_branch
          %180 = sbr.rel (%p178) target = $region28
        $region27: #{pallas_matmul.1} parent=23 // pred_region
          %s181 = sand.u32 %s43, 1
          %s182 = scalar_lea.sflag [#allocation4], %s181
          %s183 = sand.u32 %s43, 1
          %s184 = smul.addr %s183, 256
          %s185 = scalar_lea.vmem [#allocation3], %s184
          %s186 = smul.u32 32, %s19
          %s188 = ssub.s32 4096, 4096
          %189 = vsyncadd %s182, %s188
          %s190 = sadd.s32 %s21, %s186
          %s191 = smul.addr %s190, 128
          %s192 = scalar_lea.hbm %s0, %s191
          %s193 = sshll.u32 %s185, 4
          %s194 = int_to_ptr.vmem [resolvable:$true] %s193
          %199 = dma.hbm_to_vmem [thread:$0]  %s192, 4096, %s194, %s182, 128, 128, 8
        $region28: #{pallas_matmul.1} parent=23 // pred_fallthru
          _
      $region24: #{pallas_matmul.1} parent=5 // pred_fallthru
        _
      %p200 = scmp.le.s32.totalorder 1, %s12
      %p201 = scmp.lt.s32.totalorder %s12, 4
      %p202 = pnand %p200, %p201
      %p203 = pneg %p202
      // Predicated region
      $region29: #{pallas_matmul.1} parent=5 // pred_check
        _
      $region30: #{pallas_matmul.1} parent=5 // pred_check_branch
        %205 = sbr.rel (%p202) target = $region32
      $region31: #{pallas_matmul.1} parent=5 // pred_region
        %s206 = ssub.s32 %s12, 1
        %s207 = sand.u32 %s46, 1
        %s208 = scalar_lea.sflag [#allocation4], %s207
        %s209 = sand.u32 %s46, 1
        %s210 = smul.addr %s209, 256
        %s211 = scalar_lea.vmem [#allocation3], %s210
        // Predicated region
        $region33: #{pallas_matmul.1} parent=31 // pred_check
          %p212 = pneg %p59
        $region34: #{pallas_matmul.1} parent=31 // pred_check_branch
          %214 = sbr.rel (%p212) target = $region36
        $region35: #{pallas_matmul.1} parent=31 // pred_region
          %215 = dma.done %s208, 4096
        $region36: #{pallas_matmul.1} parent=31 // pred_fallthru
          _
        %s216 = sand.u32 %s46, 1
        %s217 = scalar_lea.sflag [#allocation4], %s216
        %s218 = sand.u32 %s46, 1
        %s219 = smul.addr %s218, 256
        %s220 = scalar_lea.vmem [#allocation3], %s219
        %p221 = pneg %p59
        %p222 = pneg %p56
        %s223 = smul.u32 16, %s24
        %p224 = scmp.lt.s32.totalorder %s223, 15
        %s225 = scalar_select %p224, %s223, 15
        %p226 = scmp.lt.s32.totalorder %s23, 0
        %s227 = scalar_select %p226, %s23, 0
        %s228 = sadd.s32 %s227, %s225
        %s229 = smul.addr %s228, 8
        %s230 = scalar_lea.vmem %s1, %s229
        %p231 = pneg %p87
        %p232 = pneg %p84
        %p233 = scmp.lt.s32.totalorder %s23, 0
        %s234 = scalar_select %p233, %s23, 0
        %s235 = scalar_lea.vmem %s2, %s234
        %p236 = pneg %p113
        %p237 = pneg %p110
        %p238 = pneg %p141
        %p239 = pneg %p138
        %s240 = smul.u32 32, %s22
        %p241 = scmp.lt.s32.totalorder %s240, 95
        %s242 = scalar_select %p241, %s240, 95
        %p243 = scmp.lt.s32.totalorder %s23, 0
        %s244 = scalar_select %p243, %s23, 0
        %s245 = sadd.s32 %s244, %s242
        %s246 = smul.addr %s245, 8
        %s247 = scalar_lea.vmem %s3, %s246
        %s248 = smul.u32 32, %s22
        %s249 = smul.u32 16, %s24
        %p250 = scmp.lt.s32.totalorder %s249, 15
        %s251 = scalar_select %p250, %s249, 15
        %p252 = scmp.lt.s32.totalorder %s23, 0
        %s253 = scalar_select %p252, %s23, 0
        %s254 = sadd.s32 %s253, %s251
        %s255 = smul.addr %s254, 8
        %s256 = scalar_lea.vmem %s1, %s255
        %s257 = smul.u32 16, %s24
        %p258 = scmp.lt.s32.totalorder %s23, 0
        %s259 = scalar_select %p258, %s23, 0
        %s260 = scalar_lea.vmem %s2, %s259
        %s261 = smul.u32 32, %s22
        %p262 = scmp.lt.s32.totalorder %s261, 95
        %s263 = scalar_select %p262, %s261, 95
        %p264 = scmp.lt.s32.totalorder %s23, 0
        %s265 = scalar_select %p264, %s23, 0
        %s266 = sadd.s32 %s265, %s263
        %s267 = smul.addr %s266, 8
        %s268 = scalar_lea.vmem %s3, %s267
        %s269 = smul.u32 32, %s22
        %p270 = scmp.eq.s32.totalorder %s24, 0
        // Predicated region
        $region37: #{pallas_matmul.1} parent=31 // pred_check
          %p271 = pneg %p270
        $region38: #{pallas_matmul.1} parent=31 // pred_check_branch
          %273 = sbr.rel (%p271) target = $region40
        $region39: #{pallas_matmul.1} parent=31 // pred_region
          %274 = vst [vmem:[#allocation2] sm:$0xff] 0.0
          %275 = vst [vmem:[#allocation2 + $0x8] sm:$0xff] 0.0
          %276 = vst [vmem:[#allocation2 + $0x10] sm:$0xff] 0.0
          %277 = vst [vmem:[#allocation2 + $0x18] sm:$0xff] 0.0
          %278 = vst [vmem:[#allocation2 + $0x20] sm:$0xff] 0.0
          %279 = vst [vmem:[#allocation2 + $0x28] sm:$0xff] 0.0
          %280 = vst [vmem:[#allocation2 + $0x30] sm:$0xff] 0.0
          %281 = vst [vmem:[#allocation2 + $0x38] sm:$0xff] 0.0
          %282 = vst [vmem:[#allocation2 + $0x40] sm:$0xff] 0.0
          %283 = vst [vmem:[#allocation2 + $0x48] sm:$0xff] 0.0
          %284 = vst [vmem:[#allocation2 + $0x50] sm:$0xff] 0.0
          %285 = vst [vmem:[#allocation2 + $0x58] sm:$0xff] 0.0
          %286 = vst [vmem:[#allocation2 + $0x60] sm:$0xff] 0.0
          %287 = vst [vmem:[#allocation2 + $0x68] sm:$0xff] 0.0
          %288 = vst [vmem:[#allocation2 + $0x70] sm:$0xff] 0.0
          %289 = vst [vmem:[#allocation2 + $0x78] sm:$0xff] 0.0
          %290 = vst [vmem:[#allocation2 + $0x80] sm:$0xff] 0.0
          %291 = vst [vmem:[#allocation2 + $0x88] sm:$0xff] 0.0
          %292 = vst [vmem:[#allocation2 + $0x90] sm:$0xff] 0.0
          %293 = vst [vmem:[#allocation2 + $0x98] sm:$0xff] 0.0
          %294 = vst [vmem:[#allocation2 + $0xa0] sm:$0xff] 0.0
          %295 = vst [vmem:[#allocation2 + $0xa8] sm:$0xff] 0.0
          %296 = vst [vmem:[#allocation2 + $0xb0] sm:$0xff] 0.0
          %297 = vst [vmem:[#allocation2 + $0xb8] sm:$0xff] 0.0
          %298 = vst [vmem:[#allocation2 + $0xc0] sm:$0xff] 0.0
          %299 = vst [vmem:[#allocation2 + $0xc8] sm:$0xff] 0.0
          %300 = vst [vmem:[#allocation2 + $0xd0] sm:$0xff] 0.0
          %301 = vst [vmem:[#allocation2 + $0xd8] sm:$0xff] 0.0
          %302 = vst [vmem:[#allocation2 + $0xe0] sm:$0xff] 0.0
          %303 = vst [vmem:[#allocation2 + $0xe8] sm:$0xff] 0.0
          %304 = vst [vmem:[#allocation2 + $0xf0] sm:$0xff] 0.0
          %305 = vst [vmem:[#allocation2 + $0xf8] sm:$0xff] 0.0
        $region40: #{pallas_matmul.1} parent=31 // pred_fallthru
          _
        %v306 = vld [vmem:[#allocation2] sm:$0xff]
        %v307 = vld [vmem:[#allocation2 + $0x8] sm:$0xff]
        %v308 = vld [vmem:[#allocation2 + $0x10] sm:$0xff]
        %v309 = vld [vmem:[#allocation2 + $0x18] sm:$0xff]
        %v310 = vld [vmem:[#allocation2 + $0x20] sm:$0xff]
        %v311 = vld [vmem:[#allocation2 + $0x28] sm:$0xff]
        %v312 = vld [vmem:[#allocation2 + $0x30] sm:$0xff]
        %v313 = vld [vmem:[#allocation2 + $0x38] sm:$0xff]
        %v314 = vld [vmem:[#allocation2 + $0x40] sm:$0xff]
        %v315 = vld [vmem:[#allocation2 + $0x48] sm:$0xff]
        %v316 = vld [vmem:[#allocation2 + $0x50] sm:$0xff]
        %v317 = vld [vmem:[#allocation2 + $0x58] sm:$0xff]
        %v318 = vld [vmem:[#allocation2 + $0x60] sm:$0xff]
        %v319 = vld [vmem:[#allocation2 + $0x68] sm:$0xff]
        %v320 = vld [vmem:[#allocation2 + $0x70] sm:$0xff]
        %v321 = vld [vmem:[#allocation2 + $0x78] sm:$0xff]
        %v322 = vld [vmem:[#allocation2 + $0x80] sm:$0xff]
        %v323 = vld [vmem:[#allocation2 + $0x88] sm:$0xff]
        %v324 = vld [vmem:[#allocation2 + $0x90] sm:$0xff]
        %v325 = vld [vmem:[#allocation2 + $0x98] sm:$0xff]
        %v326 = vld [vmem:[#allocation2 + $0xa0] sm:$0xff]
        %v327 = vld [vmem:[#allocation2 + $0xa8] sm:$0xff]
        %v328 = vld [vmem:[#allocation2 + $0xb0] sm:$0xff]
        %v329 = vld [vmem:[#allocation2 + $0xb8] sm:$0xff]
        %v330 = vld [vmem:[#allocation2 + $0xc0] sm:$0xff]
        %v331 = vld [vmem:[#allocation2 + $0xc8] sm:$0xff]
        %v332 = vld [vmem:[#allocation2 + $0xd0] sm:$0xff]
        %v333 = vld [vmem:[#allocation2 + $0xd8] sm:$0xff]
        %v334 = vld [vmem:[#allocation2 + $0xe0] sm:$0xff]
        %v335 = vld [vmem:[#allocation2 + $0xe8] sm:$0xff]
        %v336 = vld [vmem:[#allocation2 + $0xf0] sm:$0xff]
        %v337 = vld [vmem:[#allocation2 + $0xf8] sm:$0xff]
        %v338 = vld [vmem:[%s211] sm:$0xff]
        %v339 = vld [vmem:[%s211 + $0x8] sm:$0xff]
        %v340 = vld [vmem:[%s211 + $0x10] sm:$0xff]
        %v341 = vld [vmem:[%s211 + $0x18] sm:$0xff]
        %v342 = vld [vmem:[%s211 + $0x20] sm:$0xff]
        %v343 = vld [vmem:[%s211 + $0x28] sm:$0xff]
        %v344 = vld [vmem:[%s211 + $0x30] sm:$0xff]
        %v345 = vld [vmem:[%s211 + $0x38] sm:$0xff]
        %v346 = vld [vmem:[%s211 + $0x40] sm:$0xff]
        %v347 = vld [vmem:[%s211 + $0x48] sm:$0xff]
        %v348 = vld [vmem:[%s211 + $0x50] sm:$0xff]
        %v349 = vld [vmem:[%s211 + $0x58] sm:$0xff]
        %v350 = vld [vmem:[%s211 + $0x60] sm:$0xff]
        %v351 = vld [vmem:[%s211 + $0x68] sm:$0xff]
        %v352 = vld [vmem:[%s211 + $0x70] sm:$0xff]
        %v353 = vld [vmem:[%s211 + $0x78] sm:$0xff]
        %v354 = vld [vmem:[%s211 + $0x80] sm:$0xff]
        %v355 = vld [vmem:[%s211 + $0x88] sm:$0xff]
        %v356 = vld [vmem:[%s211 + $0x90] sm:$0xff]
        %v357 = vld [vmem:[%s211 + $0x98] sm:$0xff]
        %v358 = vld [vmem:[%s211 + $0xa0] sm:$0xff]
        %v359 = vld [vmem:[%s211 + $0xa8] sm:$0xff]
        %v360 = vld [vmem:[%s211 + $0xb0] sm:$0xff]
        %v361 = vld [vmem:[%s211 + $0xb8] sm:$0xff]
        %v362 = vld [vmem:[%s211 + $0xc0] sm:$0xff]
        %v363 = vld [vmem:[%s211 + $0xc8] sm:$0xff]
        %v364 = vld [vmem:[%s211 + $0xd0] sm:$0xff]
        %v365 = vld [vmem:[%s211 + $0xd8] sm:$0xff]
        %v366 = vld [vmem:[%s211 + $0xe0] sm:$0xff]
        %v367 = vld [vmem:[%s211 + $0xe8] sm:$0xff]
        %v368 = vld [vmem:[%s211 + $0xf0] sm:$0xff]
        %v369 = vld [vmem:[%s211 + $0xf8] sm:$0xff]
        %v370 = vld [vmem:[%s256] sm:$0xff]
        %v371 = vld [vmem:[%s256 + $0x8] sm:$0xff]
        %v372 = vld [vmem:[%s256 + $0x10] sm:$0xff]
        %v373 = vld [vmem:[%s256 + $0x18] sm:$0xff]
        %v374 = vld [vmem:[%s256 + $0x20] sm:$0xff]
        %v375 = vld [vmem:[%s256 + $0x28] sm:$0xff]
        %v376 = vld [vmem:[%s256 + $0x30] sm:$0xff]
        %v377 = vld [vmem:[%s256 + $0x38] sm:$0xff]
        %v378 = vld [vmem:[%s256 + $0x40] sm:$0xff]
        %v379 = vld [vmem:[%s256 + $0x48] sm:$0xff]
        %v380 = vld [vmem:[%s256 + $0x50] sm:$0xff]
        %v381 = vld [vmem:[%s256 + $0x58] sm:$0xff]
        %v382 = vld [vmem:[%s256 + $0x60] sm:$0xff]
        %v383 = vld [vmem:[%s256 + $0x68] sm:$0xff]
        %v384 = vld [vmem:[%s256 + $0x70] sm:$0xff]
        %v385 = vld [vmem:[%s256 + $0x78] sm:$0xff]
        %386 = vmatprep.subr.mxu0 0.0
        %387 = vmatpush1.msra.mxu0 %v370
        %388 = vmatprep.subr.mxu0 0.0
        %389 = vmatpush1.msra.mxu0 %v371
        %390 = vmatprep.subr.mxu0 0.0
        %391 = vmatpush1.msra.mxu0 %v372
        %392 = vmatprep.subr.mxu0 0.0
        %393 = vmatpush1.msra.mxu0 %v373
        %394 = vmatprep.subr.mxu0 0.0
        %395 = vmatpush1.msra.mxu0 %v374
        %396 = vmatprep.subr.mxu0 0.0
        %397 = vmatpush1.msra.mxu0 %v375
        %398 = vmatprep.subr.mxu0 0.0
        %399 = vmatpush1.msra.mxu0 %v376
        %400 = vmatprep.subr.mxu0 0.0
        %401 = vmatpush1.msra.mxu0 %v377
        %402 = vmatprep.subr.mxu0 0.0
        %403 = vmatpush1.msra.mxu0 %v378
        %404 = vmatprep.subr.mxu0 0.0
        %405 = vmatpush1.msra.mxu0 %v379
        %406 = vmatprep.subr.mxu0 0.0
        %407 = vmatpush1.msra.mxu0 %v380
        %408 = vmatprep.subr.mxu0 0.0
        %409 = vmatpush1.msra.mxu0 %v381
        %410 = vmatprep.subr.mxu0 0.0
        %411 = vmatpush1.msra.mxu0 %v382
        %412 = vmatprep.subr.mxu0 0.0
        %413 = vmatpush1.msra.mxu0 %v383
        %414 = vmatprep.subr.mxu0 0.0
        %415 = vmatpush1.msra.mxu0 %v384
        %416 = vmatprep.subr.mxu0 0.0
        %417 = vmatpush1.msra.mxu0 %v385
        %418 = vmatprep.subr.mxu0 0.0
        %419 = vmatpush1.msra.mxu0 0.0
        %420 = vmatprep.subr.mxu0 0.0
        %421 = vmatpush1.msra.mxu0 0.0
        %422 = vmatprep.subr.mxu0 0.0
        %423 = vmatpush1.msra.mxu0 0.0
        %424 = vmatprep.subr.mxu0 0.0
        %425 = vmatpush1.msra.mxu0 0.0
        %426 = vmatprep.subr.mxu0 0.0
        %427 = vmatpush1.msra.mxu0 0.0
        %428 = vmatprep.subr.mxu0 0.0
        %429 = vmatpush1.msra.mxu0 0.0
        %430 = vmatprep.subr.mxu0 0.0
        %431 = vmatpush1.msra.mxu0 0.0
        %432 = vmatprep.subr.mxu0 0.0
        %433 = vmatpush1.msra.mxu0 0.0
        %434 = vmatprep.subr.mxu0 0.0
        %435 = vmatpush1.msra.mxu0 0.0
        %436 = vmatprep.subr.mxu0 0.0
        %437 = vmatpush1.msra.mxu0 0.0
        %438 = vmatprep.subr.mxu0 0.0
        %439 = vmatpush1.msra.mxu0 0.0
        %440 = vmatprep.subr.mxu0 0.0
        %441 = vmatpush1.msra.mxu0 0.0
        %442 = vmatprep.subr.mxu0 0.0
        %443 = vmatpush1.msra.mxu0 0.0
        %444 = vmatprep.subr.mxu0 0.0
        %445 = vmatpush1.msra.mxu0 0.0
        %446 = vmatprep.subr.mxu0 0.0
        %447 = vmatpush1.msra.mxu0 0.0
        %448 = vmatprep.subr.mxu0 0.0
        %449 = vmatpush1.msra.mxu0 0.0
        %450 = vmatprep.mubr.f32.mxu0 0.0
        %451 = vmatmul.mubr.f32.gmra.mrb[0].mxu0 %v338
        %v452 = vpop.f32.mrb[0].mxu0
        %v453 = vadd.f32 0.0, %v452
        %v454 = vpop.f32.mrb[0].mxu0
        %455 = vmatprep.mubr.f32.mxu0 0.0
        %456 = vmatmul.mubr.f32.gmra.mrb[0].mxu0 %v339
        %v457 = vpop.f32.mrb[0].mxu0
        %v458 = vadd.f32 0.0, %v457
        %v459 = vpop.f32.mrb[0].mxu0
        %460 = vmatprep.mubr.f32.mxu0 0.0
        %461 = vmatmul.mubr.f32.gmra.mrb[0].mxu0 %v340
        %v462 = vpop.f32.mrb[0].mxu0
        %v463 = vadd.f32 0.0, %v462
        %v464 = vpop.f32.mrb[0].mxu0
        %465 = vmatprep.mubr.f32.mxu0 0.0
        %466 = vmatmul.mubr.f32.gmra.mrb[0].mxu0 %v341
        %v467 = vpop.f32.mrb[0].mxu0
        %v468 = vadd.f32 0.0, %v467
        %v469 = vpop.f32.mrb[0].mxu0
        %470 = vmatprep.mubr.f32.mxu0 0.0
        %471 = vmatmul.mubr.f32.gmra.mrb[0].mxu0 %v342
        %v472 = vpop.f32.mrb[0].mxu0
        %v473 = vadd.f32 0.0, %v472
        %v474 = vpop.f32.mrb[0].mxu0
        %475 = vmatprep.mubr.f32.mxu0 0.0
        %476 = vmatmul.mubr.f32.gmra.mrb[0].mxu0 %v343
        %v477 = vpop.f32.mrb[0].mxu0
        %v478 = vadd.f32 0.0, %v477
        %v479 = vpop.f32.mrb[0].mxu0
        %480 = vmatprep.mubr.f32.mxu0 0.0
        %481 = vmatmul.mubr.f32.gmra.mrb[0].mxu0 %v344
        %v482 = vpop.f32.mrb[0].mxu0
        %v483 = vadd.f32 0.0, %v482
        %v484 = vpop.f32.mrb[0].mxu0
        %485 = vmatprep.mubr.f32.mxu0 0.0
        %486 = vmatmul.mubr.f32.gmra.mrb[0].mxu0 %v345
        %v487 = vpop.f32.mrb[0].mxu0
        %v488 = vadd.f32 0.0, %v487
        %v489 = vpop.f32.mrb[0].mxu0
        %490 = vmatprep.mubr.f32.mxu0 0.0
        %491 = vmatmul.mubr.f32.gmra.mrb[0].mxu0 %v346
        %v492 = vpop.f32.mrb[0].mxu0
        %v493 = vadd.f32 0.0, %v492
        %v494 = vpop.f32.mrb[0].mxu0
        %495 = vmatprep.mubr.f32.mxu0 0.0
        %496 = vmatmul.mubr.f32.gmra.mrb[0].mxu0 %v347
        %v497 = vpop.f32.mrb[0].mxu0
        %v498 = vadd.f32 0.0, %v497
        %v499 = vpop.f32.mrb[0].mxu0
        %500 = vmatprep.mubr.f32.mxu0 0.0
        %501 = vmatmul.mubr.f32.gmra.mrb[0].mxu0 %v348
        %v502 = vpop.f32.mrb[0].mxu0
        %v503 = vadd.f32 0.0, %v502
        %v504 = vpop.f32.mrb[0].mxu0
        %505 = vmatprep.mubr.f32.mxu0 0.0
        %506 = vmatmul.mubr.f32.gmra.mrb[0].mxu0 %v349
        %v507 = vpop.f32.mrb[0].mxu0
        %v508 = vadd.f32 0.0, %v507
        %v509 = vpop.f32.mrb[0].mxu0
        %510 = vmatprep.mubr.f32.mxu0 0.0
        %511 = vmatmul.mubr.f32.gmra.mrb[0].mxu0 %v350
        %v512 = vpop.f32.mrb[0].mxu0
        %v513 = vadd.f32 0.0, %v512
        %v514 = vpop.f32.mrb[0].mxu0
        %515 = vmatprep.mubr.f32.mxu0 0.0
        %516 = vmatmul.mubr.f32.gmra.mrb[0].mxu0 %v351
        %v517 = vpop.f32.mrb[0].mxu0
        %v518 = vadd.f32 0.0, %v517
        %v519 = vpop.f32.mrb[0].mxu0
        %520 = vmatprep.mubr.f32.mxu0 0.0
        %521 = vmatmul.mubr.f32.gmra.mrb[0].mxu0 %v352
        %v522 = vpop.f32.mrb[0].mxu0
        %v523 = vadd.f32 0.0, %v522
        %v524 = vpop.f32.mrb[0].mxu0
        %525 = vmatprep.mubr.f32.mxu0 0.0
        %526 = vmatmul.mubr.f32.gmra.mrb[0].mxu0 %v353
        %v527 = vpop.f32.mrb[0].mxu0
        %v528 = vadd.f32 0.0, %v527
        %v529 = vpop.f32.mrb[0].mxu0
        %530 = vmatprep.mubr.f32.mxu0 0.0
        %531 = vmatmul.mubr.f32.gmra.mrb[0].mxu0 %v354
        %v532 = vpop.f32.mrb[0].mxu0
        %v533 = vadd.f32 0.0, %v532
        %v534 = vpop.f32.mrb[0].mxu0
        %535 = vmatprep.mubr.f32.mxu0 0.0
        %536 = vmatmul.mubr.f32.gmra.mrb[0].mxu0 %v355
        %v537 = vpop.f32.mrb[0].mxu0
        %v538 = vadd.f32 0.0, %v537
        %v539 = vpop.f32.mrb[0].mxu0
        %540 = vmatprep.mubr.f32.mxu0 0.0
        %541 = vmatmul.mubr.f32.gmra.mrb[0].mxu0 %v356
        %v542 = vpop.f32.mrb[0].mxu0
        %v543 = vadd.f32 0.0, %v542
        %v544 = vpop.f32.mrb[0].mxu0
        %545 = vmatprep.mubr.f32.mxu0 0.0
        %546 = vmatmul.mubr.f32.gmra.mrb[0].mxu0 %v357
        %v547 = vpop.f32.mrb[0].mxu0
        %v548 = vadd.f32 0.0, %v547
        %v549 = vpop.f32.mrb[0].mxu0
        %550 = vmatprep.mubr.f32.mxu0 0.0
        %551 = vmatmul.mubr.f32.gmra.mrb[0].mxu0 %v358
        %v552 = vpop.f32.mrb[0].mxu0
        %v553 = vadd.f32 0.0, %v552
        %v554 = vpop.f32.mrb[0].mxu0
        %555 = vmatprep.mubr.f32.mxu0 0.0
        %556 = vmatmul.mubr.f32.gmra.mrb[0].mxu0 %v359
        %v557 = vpop.f32.mrb[0].mxu0
        %v558 = vadd.f32 0.0, %v557
        %v559 = vpop.f32.mrb[0].mxu0
        %560 = vmatprep.mubr.f32.mxu0 0.0
        %561 = vmatmul.mubr.f32.gmra.mrb[0].mxu0 %v360
        %v562 = vpop.f32.mrb[0].mxu0
        %v563 = vadd.f32 0.0, %v562
        %v564 = vpop.f32.mrb[0].mxu0
        %565 = vmatprep.mubr.f32.mxu0 0.0
        %566 = vmatmul.mubr.f32.gmra.mrb[0].mxu0 %v361
        %v567 = vpop.f32.mrb[0].mxu0
        %v568 = vadd.f32 0.0, %v567
        %v569 = vpop.f32.mrb[0].mxu0
        %570 = vmatprep.mubr.f32.mxu0 0.0
        %571 = vmatmul.mubr.f32.gmra.mrb[0].mxu0 %v362
        %v572 = vpop.f32.mrb[0].mxu0
        %v573 = vadd.f32 0.0, %v572
        %v574 = vpop.f32.mrb[0].mxu0
        %575 = vmatprep.mubr.f32.mxu0 0.0
        %576 = vmatmul.mubr.f32.gmra.mrb[0].mxu0 %v363
        %v577 = vpop.f32.mrb[0].mxu0
        %v578 = vadd.f32 0.0, %v577
        %v579 = vpop.f32.mrb[0].mxu0
        %580 = vmatprep.mubr.f32.mxu0 0.0
        %581 = vmatmul.mubr.f32.gmra.mrb[0].mxu0 %v364
        %v582 = vpop.f32.mrb[0].mxu0
        %v583 = vadd.f32 0.0, %v582
        %v584 = vpop.f32.mrb[0].mxu0
        %585 = vmatprep.mubr.f32.mxu0 0.0
        %586 = vmatmul.mubr.f32.gmra.mrb[0].mxu0 %v365
        %v587 = vpop.f32.mrb[0].mxu0
        %v588 = vadd.f32 0.0, %v587
        %v589 = vpop.f32.mrb[0].mxu0
        %590 = vmatprep.mubr.f32.mxu0 0.0
        %591 = vmatmul.mubr.f32.gmra.mrb[0].mxu0 %v366
        %v592 = vpop.f32.mrb[0].mxu0
        %v593 = vadd.f32 0.0, %v592
        %v594 = vpop.f32.mrb[0].mxu0
        %595 = vmatprep.mubr.f32.mxu0 0.0
        %596 = vmatmul.mubr.f32.gmra.mrb[0].mxu0 %v367
        %v597 = vpop.f32.mrb[0].mxu0
        %v598 = vadd.f32 0.0, %v597
        %v599 = vpop.f32.mrb[0].mxu0
        %600 = vmatprep.mubr.f32.mxu0 0.0
        %601 = vmatmul.mubr.f32.gmra.mrb[0].mxu0 %v368
        %v602 = vpop.f32.mrb[0].mxu0
        %v603 = vadd.f32 0.0, %v602
        %v604 = vpop.f32.mrb[0].mxu0
        %605 = vmatprep.mubr.f32.mxu0 0.0
        %606 = vmatmul.mubr.f32.gmra.mrb[0].mxu0 %v369
        %v607 = vpop.f32.mrb[0].mxu0
        %v608 = vadd.f32 0.0, %v607
        %v609 = vpop.f32.mrb[0].mxu0
        %610 = vdwg.mxu0
        %v611 = vadd.f32 %v306, %v453
        %v612 = vadd.f32 %v307, %v458
        %v613 = vadd.f32 %v308, %v463
        %v614 = vadd.f32 %v309, %v468
        %v615 = vadd.f32 %v310, %v473
        %v616 = vadd.f32 %v311, %v478
        %v617 = vadd.f32 %v312, %v483
        %v618 = vadd.f32 %v313, %v488
        %v619 = vadd.f32 %v314, %v493
        %v620 = vadd.f32 %v315, %v498
        %v621 = vadd.f32 %v316, %v503
        %v622 = vadd.f32 %v317, %v508
        %v623 = vadd.f32 %v318, %v513
        %v624 = vadd.f32 %v319, %v518
        %v625 = vadd.f32 %v320, %v523
        %v626 = vadd.f32 %v321, %v528
        %v627 = vadd.f32 %v322, %v533
        %v628 = vadd.f32 %v323, %v538
        %v629 = vadd.f32 %v324, %v543
        %v630 = vadd.f32 %v325, %v548
        %v631 = vadd.f32 %v326, %v553
        %v632 = vadd.f32 %v327, %v558
        %v633 = vadd.f32 %v328, %v563
        %v634 = vadd.f32 %v329, %v568
        %v635 = vadd.f32 %v330, %v573
        %v636 = vadd.f32 %v331, %v578
        %v637 = vadd.f32 %v332, %v583
        %v638 = vadd.f32 %v333, %v588
        %v639 = vadd.f32 %v334, %v593
        %v640 = vadd.f32 %v335, %v598
        %v641 = vadd.f32 %v336, %v603
        %v642 = vadd.f32 %v337, %v608
        %643 = vst [vmem:[#allocation2] sm:$0xff] %v611
        %644 = vst [vmem:[#allocation2 + $0x8] sm:$0xff] %v612
        %645 = vst [vmem:[#allocation2 + $0x10] sm:$0xff] %v613
        %646 = vst [vmem:[#allocation2 + $0x18] sm:$0xff] %v614
        %647 = vst [vmem:[#allocation2 + $0x20] sm:$0xff] %v615
        %648 = vst [vmem:[#allocation2 + $0x28] sm:$0xff] %v616
        %649 = vst [vmem:[#allocation2 + $0x30] sm:$0xff] %v617
        %650 = vst [vmem:[#allocation2 + $0x38] sm:$0xff] %v618
        %651 = vst [vmem:[#allocation2 + $0x40] sm:$0xff] %v619
        %652 = vst [vmem:[#allocation2 + $0x48] sm:$0xff] %v620
        %653 = vst [vmem:[#allocation2 + $0x50] sm:$0xff] %v621
        %654 = vst [vmem:[#allocation2 + $0x58] sm:$0xff] %v622
        %655 = vst [vmem:[#allocation2 + $0x60] sm:$0xff] %v623
        %656 = vst [vmem:[#allocation2 + $0x68] sm:$0xff] %v624
        %657 = vst [vmem:[#allocation2 + $0x70] sm:$0xff] %v625
        %658 = vst [vmem:[#allocation2 + $0x78] sm:$0xff] %v626
        %659 = vst [vmem:[#allocation2 + $0x80] sm:$0xff] %v627
        %660 = vst [vmem:[#allocation2 + $0x88] sm:$0xff] %v628
        %661 = vst [vmem:[#allocation2 + $0x90] sm:$0xff] %v629
        %662 = vst [vmem:[#allocation2 + $0x98] sm:$0xff] %v630
        %663 = vst [vmem:[#allocation2 + $0xa0] sm:$0xff] %v631
        %664 = vst [vmem:[#allocation2 + $0xa8] sm:$0xff] %v632
        %665 = vst [vmem:[#allocation2 + $0xb0] sm:$0xff] %v633
        %666 = vst [vmem:[#allocation2 + $0xb8] sm:$0xff] %v634
        %667 = vst [vmem:[#allocation2 + $0xc0] sm:$0xff] %v635
        %668 = vst [vmem:[#allocation2 + $0xc8] sm:$0xff] %v636
        %669 = vst [vmem:[#allocation2 + $0xd0] sm:$0xff] %v637
        %670 = vst [vmem:[#allocation2 + $0xd8] sm:$0xff] %v638
        %671 = vst [vmem:[#allocation2 + $0xe0] sm:$0xff] %v639
        %672 = vst [vmem:[#allocation2 + $0xe8] sm:$0xff] %v640
        %673 = vst [vmem:[#allocation2 + $0xf0] sm:$0xff] %v641
        %674 = vst [vmem:[#allocation2 + $0xf8] sm:$0xff] %v642
        // Predicated region
        $region41: #{pallas_matmul.1} parent=31 // pred_check
          %p675 = pneg %p270
        $region42: #{pallas_matmul.1} parent=31 // pred_check_branch
          %677 = sbr.rel (%p675) target = $region44
        $region43: #{pallas_matmul.1} parent=31 // pred_region
          %v678 = vld [vmem:[#allocation2] sm:$0xff]
          %v679 = vld [vmem:[#allocation2 + $0x8] sm:$0xff]
          %v680 = vld [vmem:[#allocation2 + $0x10] sm:$0xff]
          %v681 = vld [vmem:[#allocation2 + $0x18] sm:$0xff]
          %v682 = vld [vmem:[#allocation2 + $0x20] sm:$0xff]
          %v683 = vld [vmem:[#allocation2 + $0x28] sm:$0xff]
          %v684 = vld [vmem:[#allocation2 + $0x30] sm:$0xff]
          %v685 = vld [vmem:[#allocation2 + $0x38] sm:$0xff]
          %v686 = vld [vmem:[#allocation2 + $0x40] sm:$0xff]
          %v687 = vld [vmem:[#allocation2 + $0x48] sm:$0xff]
          %v688 = vld [vmem:[#allocation2 + $0x50] sm:$0xff]
          %v689 = vld [vmem:[#allocation2 + $0x58] sm:$0xff]
          %v690 = vld [vmem:[#allocation2 + $0x60] sm:$0xff]
          %v691 = vld [vmem:[#allocation2 + $0x68] sm:$0xff]
          %v692 = vld [vmem:[#allocation2 + $0x70] sm:$0xff]
          %v693 = vld [vmem:[#allocation2 + $0x78] sm:$0xff]
          %v694 = vld [vmem:[#allocation2 + $0x80] sm:$0xff]
          %v695 = vld [vmem:[#allocation2 + $0x88] sm:$0xff]
          %v696 = vld [vmem:[#allocation2 + $0x90] sm:$0xff]
          %v697 = vld [vmem:[#allocation2 + $0x98] sm:$0xff]
          %v698 = vld [vmem:[#allocation2 + $0xa0] sm:$0xff]
          %v699 = vld [vmem:[#allocation2 + $0xa8] sm:$0xff]
          %v700 = vld [vmem:[#allocation2 + $0xb0] sm:$0xff]
          %v701 = vld [vmem:[#allocation2 + $0xb8] sm:$0xff]
          %v702 = vld [vmem:[#allocation2 + $0xc0] sm:$0xff]
          %v703 = vld [vmem:[#allocation2 + $0xc8] sm:$0xff]
          %v704 = vld [vmem:[#allocation2 + $0xd0] sm:$0xff]
          %v705 = vld [vmem:[#allocation2 + $0xd8] sm:$0xff]
          %v706 = vld [vmem:[#allocation2 + $0xe0] sm:$0xff]
          %v707 = vld [vmem:[#allocation2 + $0xe8] sm:$0xff]
          %v708 = vld [vmem:[#allocation2 + $0xf0] sm:$0xff]
          %v709 = vld [vmem:[#allocation2 + $0xf8] sm:$0xff]
          %v710 = vld [vmem:[%s260] sm:$0x1]
          %v712 = vlaneseq
          %v713 = vshrl.u32 %v712, 7
          %v714 = vsub.s32 0, %v713
          %v715 = vrot.slane %v710, %v714
          %v717 = vadd.f32 %v678, %v715
          %v718 = vadd.f32 %v679, %v715
          %v719 = vadd.f32 %v680, %v715
          %v720 = vadd.f32 %v681, %v715
          %v721 = vadd.f32 %v682, %v715
          %v722 = vadd.f32 %v683, %v715
          %v723 = vadd.f32 %v684, %v715
          %v724 = vadd.f32 %v685, %v715
          %v725 = vadd.f32 %v686, %v715
          %v726 = vadd.f32 %v687, %v715
          %v727 = vadd.f32 %v688, %v715
          %v728 = vadd.f32 %v689, %v715
          %v729 = vadd.f32 %v690, %v715
          %v730 = vadd.f32 %v691, %v715
          %v731 = vadd.f32 %v692, %v715
          %v732 = vadd.f32 %v693, %v715
          %v733 = vadd.f32 %v694, %v715
          %v734 = vadd.f32 %v695, %v715
          %v735 = vadd.f32 %v696, %v715
          %v736 = vadd.f32 %v697, %v715
          %v737 = vadd.f32 %v698, %v715
          %v738 = vadd.f32 %v699, %v715
          %v739 = vadd.f32 %v700, %v715
          %v740 = vadd.f32 %v701, %v715
          %v741 = vadd.f32 %v702, %v715
          %v742 = vadd.f32 %v703, %v715
          %v743 = vadd.f32 %v704, %v715
          %v744 = vadd.f32 %v705, %v715
          %v745 = vadd.f32 %v706, %v715
          %v746 = vadd.f32 %v707, %v715
          %v747 = vadd.f32 %v708, %v715
          %v748 = vadd.f32 %v709, %v715
          %749 = vst [vmem:[%s268] sm:$0xff] %v717
          %750 = vst [vmem:[%s268 + $0x8] sm:$0xff] %v718
          %751 = vst [vmem:[%s268 + $0x10] sm:$0xff] %v719
          %752 = vst [vmem:[%s268 + $0x18] sm:$0xff] %v720
          %753 = vst [vmem:[%s268 + $0x20] sm:$0xff] %v721
          %754 = vst [vmem:[%s268 + $0x28] sm:$0xff] %v722
          %755 = vst [vmem:[%s268 + $0x30] sm:$0xff] %v723
          %756 = vst [vmem:[%s268 + $0x38] sm:$0xff] %v724
          %757 = vst [vmem:[%s268 + $0x40] sm:$0xff] %v725
          %758 = vst [vmem:[%s268 + $0x48] sm:$0xff] %v726
          %759 = vst [vmem:[%s268 + $0x50] sm:$0xff] %v727
          %760 = vst [vmem:[%s268 + $0x58] sm:$0xff] %v728
          %761 = vst [vmem:[%s268 + $0x60] sm:$0xff] %v729
          %762 = vst [vmem:[%s268 + $0x68] sm:$0xff] %v730
          %763 = vst [vmem:[%s268 + $0x70] sm:$0xff] %v731
          %764 = vst [vmem:[%s268 + $0x78] sm:$0xff] %v732
          %765 = vst [vmem:[%s268 + $0x80] sm:$0xff] %v733
          %766 = vst [vmem:[%s268 + $0x88] sm:$0xff] %v734
          %767 = vst [vmem:[%s268 + $0x90] sm:$0xff] %v735
          %768 = vst [vmem:[%s268 + $0x98] sm:$0xff] %v736
          %769 = vst [vmem:[%s268 + $0xa0] sm:$0xff] %v737
          %770 = vst [vmem:[%s268 + $0xa8] sm:$0xff] %v738
          %771 = vst [vmem:[%s268 + $0xb0] sm:$0xff] %v739
          %772 = vst [vmem:[%s268 + $0xb8] sm:$0xff] %v740
          %773 = vst [vmem:[%s268 + $0xc0] sm:$0xff] %v741
          %774 = vst [vmem:[%s268 + $0xc8] sm:$0xff] %v742
          %775 = vst [vmem:[%s268 + $0xd0] sm:$0xff] %v743
          %776 = vst [vmem:[%s268 + $0xd8] sm:$0xff] %v744
          %777 = vst [vmem:[%s268 + $0xe0] sm:$0xff] %v745
          %778 = vst [vmem:[%s268 + $0xe8] sm:$0xff] %v746
          %779 = vst [vmem:[%s268 + $0xf0] sm:$0xff] %v747
          %780 = vst [vmem:[%s268 + $0xf8] sm:$0xff] %v748
        $region44: #{pallas_matmul.1} parent=31 // pred_fallthru
          _
        %s781 = smul.u32 32, %s22
        %p782 = scmp.lt.s32.totalorder %s781, 95
        %s783 = scalar_select %p782, %s781, 95
        %p784 = scmp.lt.s32.totalorder %s23, 0
        %s785 = scalar_select %p784, %s23, 0
        %s786 = sadd.s32 %s785, %s783
        %s787 = smul.addr %s786, 8
        %s788 = scalar_lea.vmem %s3, %s787
        // Predicated region
        $region45: #{pallas_matmul.1} parent=31 // pred_check
          %p789 = pneg %p138
        $region46: #{pallas_matmul.1} parent=31 // pred_check_branch
          %791 = sbr.rel (%p789) target = $region48
        $region47: #{pallas_matmul.1} parent=31 // pred_region
          %s792 = smul.u32 32, %s22
        $region48: #{pallas_matmul.1} parent=31 // pred_fallthru
          _
      $region32: #{pallas_matmul.1} parent=5 // pred_fallthru
        _
      %p793 = scmp.le.s32.totalorder 2, %s12
      // Predicated region
      $region49: #{pallas_matmul.1} parent=5 // pred_check
        %p794 = pneg %p793
      $region50: #{pallas_matmul.1} parent=5 // pred_check_branch
        %796 = sbr.rel (%p794) target = $region52
      $region51: #{pallas_matmul.1} parent=5 // pred_region
        %s797 = ssub.s32 %s12, 2
        // Predicated region
        $region53: #{pallas_matmul.1} parent=51 // pred_check
          %p798 = pneg %p144
        $region54: #{pallas_matmul.1} parent=51 // pred_check_branch
          %800 = sbr.rel (%p798) target = $region56
        $region55: #{pallas_matmul.1} parent=51 // pred_region
          %s801 = smul.u32 32, %s25
          %p802 = scmp.lt.s32.totalorder %s801, 95
          %s803 = scalar_select %p802, %s801, 95
          %p804 = scmp.lt.s32.totalorder %s26, 0
          %s805 = scalar_select %p804, %s26, 0
          %s806 = sadd.s32 %s805, %s803
          %s807 = smul.addr %s806, 8
          %s808 = scalar_lea.vmem %s3, %s807
        $region56: #{pallas_matmul.1} parent=51 // pred_fallthru
          _
      $region52: #{pallas_matmul.1} parent=5 // pred_fallthru
        _
    $region6: #{pallas_matmul.1} parent=1 // loop_footer
      %s16 = sadd.s32 1, %s12
    $region7: #{pallas_matmul.1} parent=1 // loop_footer_branch
      %11 = sbr.rel target = $region3
    $region8: #{pallas_matmul.1} parent=1 // loop_exit
      _
    %809 = vsyncpa [#allocation4], 1
    %s810 = scalar_lea.sflag [#allocation4], 1
    %811 = vsyncpa %s810, 1

</llo_original>
